<compile_context>
chip_gen: v7x
topology: tpu7x:2x2x1
jax: 0.10.0
libtpu: 0.0.40
codegen_flags: <defaults>
</compile_context>

<pallas_src>
from functools import partial

import jax
import jax.numpy as jnp
from jax.experimental import pallas as pl
from jax.experimental.pallas import tpu as pltpu


# ------------------------------------------------------------- fused kernel --

def _fused_combiner_kernel(*refs, n_enc, n_ff, red_dim, sg_dim, n_per):
    """Whole CombinerModel forward in one kernel.

    Ref order:
      a_hat, sg_x, w_gcn1, b_gcn1, w_gcn2, b_gcn2, img, periph,
      [enc_w_i, enc_b_i] * n_enc, [ff_w_i, ff_b_i] * n_ff,       (inputs)
      out,                                                        (output)
      feat_scratch                                                (VMEM scratch)
    """
    (a_ref, x_ref, wg1_ref, bg1_ref, wg2_ref, bg2_ref,
     img_ref, per_ref) = refs[:8]
    layer_refs = refs[8:8 + 2 * (n_enc + n_ff)]
    o_ref = refs[-2]
    feat_ref = refs[-1]

    # ---- GNN: GCN layer 1 (aggregate + transform + ReLU) ----
    agg = jnp.dot(a_ref[...], x_ref[...], preferred_element_type=jnp.float32)
    h1 = jnp.dot(agg, wg1_ref[...], preferred_element_type=jnp.float32)
    h1 = jnp.maximum(h1 + bg1_ref[...], 0.0)                          # (Nn, E)

    # ---- GCN layer 2 + global mean pool, folded (both linear, no ReLU) ----
    # mean_rows(A_hat @ h1 @ W2 + b2) == (mean_rows(A_hat) @ h1) @ W2 + b2
    a_mean = jnp.mean(a_ref[...], axis=0, keepdims=True)              # (1, Nn)
    pooled = jnp.dot(a_mean, h1, preferred_element_type=jnp.float32)  # (1, E)
    sg_emb = (jnp.dot(pooled, wg2_ref[...],
                      preferred_element_type=jnp.float32)
              + bg2_ref[...])                                         # (1, E)

    # ---- encoder MLP (img -> ... -> reduced img embedding), ReLU ----
    z = img_ref[...]
    idx = 0
    for _ in range(n_enc):
        w = layer_refs[idx][...]
        b = layer_refs[idx + 1][...]
        idx += 2
        z = jnp.maximum(
            jnp.dot(z, w, preferred_element_type=jnp.float32) + b, 0.0)

    # ---- in-kernel concat into VMEM scratch: [z | sg_emb | peripherals] ----
    feat_ref[:, 0:red_dim] = z
    feat_ref[:, red_dim:red_dim + sg_dim] = sg_emb
    feat_ref[:, red_dim + sg_dim:red_dim + sg_dim + n_per] = per_ref[...]
    feat = feat_ref[...]

    # ---- feed-forward classifier MLP (ReLU hidden, linear output) ----
    for i in range(n_ff):
        w = layer_refs[idx][...]
        b = layer_refs[idx + 1][...]
        idx += 2
        feat = jnp.dot(feat, w, preferred_element_type=jnp.float32) + b
        if i < n_ff - 1:
            feat = jnp.maximum(feat, 0.0)

    o_ref[...] = feat.astype(o_ref.dtype)


# ----------------------------------------------------------------- wrapper --

def _full_spec(shape):
    # whole-array block (allowed: block_shape == full array dims)
    return pl.BlockSpec(shape, lambda: (0,) * len(shape))


def fused_combiner(a_hat, sg_x, params, img_embedding, peripheral_inputs):
    w1, b1 = params["gcn1"]
    w2, b2 = params["gcn2"]
    enc = params["encoder"]
    ff = params["ffnn"]

    red_dim = enc[-1][0].shape[1]
    sg_dim = w2.shape[1]
    n_per = peripheral_inputs.shape[1]
    feat_dim = red_dim + sg_dim + n_per
    num_classes = ff[-1][0].shape[1]

    inputs = [a_hat, sg_x,
              w1, b1.reshape(1, -1), w2, b2.reshape(1, -1),
              img_embedding, peripheral_inputs]
    for (w, b) in enc:
        inputs += [w, b.reshape(1, -1)]
    for (w, b) in ff:
        inputs += [w, b.reshape(1, -1)]

    kernel = partial(_fused_combiner_kernel, n_enc=len(enc), n_ff=len(ff),
                     red_dim=red_dim, sg_dim=sg_dim, n_per=n_per)

    return pl.pallas_call(
        kernel,
        out_shape=jax.ShapeDtypeStruct((1, num_classes), jnp.float32),
        in_specs=[_full_spec(x.shape) for x in inputs],
        out_specs=_full_spec((1, num_classes)),
        scratch_shapes=[pltpu.VMEM((1, feat_dim), jnp.float32)],
    )(*inputs)


# ------------------------------------------------------------------- model --

def normalized_adjacency(edge_index, num_nodes):
    """Dense D^-1/2 (A + I) D^-1/2 from a (2, E) edge_index (plain-JAX glue).

    Uses scatter-ADD so duplicate edges accumulate, matching PyG's
    scatter-add message passing in GCNConv.
    """
    src, dst = edge_index[0], edge_index[1]
    a = jnp.zeros((num_nodes, num_nodes), jnp.float32)
    a = a.at[dst, src].add(1.0)                       # messages src -> dst
    a = a + jnp.eye(num_nodes, dtype=jnp.float32)     # self-loops
    deg = jnp.sum(a, axis=1)
    d_inv_sqrt = jnp.where(deg > 0, 1.0 / jnp.sqrt(deg), 0.0)
    return a * d_inv_sqrt[:, None] * d_inv_sqrt[None, :]


@jax.jit
def combiner_forward(params, sg_x, sg_edge_index, img_embedding,
                     peripheral_inputs):
    num_nodes = sg_x.shape[0]
    a_hat = normalized_adjacency(sg_edge_index, num_nodes)
    return fused_combiner(a_hat, sg_x, params, img_embedding,
                          peripheral_inputs)


def reference_forward(params, sg_x, sg_edge_index, img_embedding,
                      peripheral_inputs):
    """Pure-JAX reference (un-folded GCN layer 2 + explicit mean pool)."""
    a_hat = normalized_adjacency(sg_edge_index, sg_x.shape[0])
    w1, b1 = params["gcn1"]
    w2, b2 = params["gcn2"]
    h = jnp.maximum(a_hat @ sg_x @ w1 + b1, 0.0)
    h = a_hat @ h @ w2 + b2
    sg_emb = jnp.mean(h, axis=0, keepdims=True)
    z = img_embedding
    for (w, b) in params["encoder"]:
        z = jnp.maximum(z @ w + b, 0.0)
    feat = jnp.concatenate([z, sg_emb, peripheral_inputs], axis=1)
    n_ff = len(params["ffnn"])
    for i, (w, b) in enumerate(params["ffnn"]):
        feat = feat @ w + b
        if i < n_ff - 1:
            feat = jnp.maximum(feat, 0.0)
    return feat


def init_params(key, num_sg_feat, sg_emb, img_emb, red_img_emb,
                enc_hidden, num_classes, n_periph, ff_hidden):
    def dense(k, fan_in, fan_out):
        kw, kb = jax.random.split(k)
        scale = 1.0 / jnp.sqrt(jnp.float32(fan_in))
        w = jax.random.uniform(kw, (fan_in, fan_out), jnp.float32, -scale, scale)
        b = jax.random.uniform(kb, (fan_out,), jnp.float32, -scale, scale)
        return w, b

    keys = jax.random.split(key, 16)
    params = {}
    # GNN: two GCN layers
    params["gcn1"] = dense(keys[0], num_sg_feat, sg_emb)
    params["gcn2"] = dense(keys[1], sg_emb, sg_emb)
    # encoder MLP: img_emb -> enc_hidden... -> red_img_emb
    enc_dims = [img_emb] + list(enc_hidden) + [red_img_emb]
    params["encoder"] = [dense(keys[2 + i], enc_dims[i], enc_dims[i + 1])
                         for i in range(len(enc_dims) - 1)]
    # feed-forward MLP: (red_img_emb + sg_emb + n_periph) -> ff_hidden... -> C
    ff_dims = [red_img_emb + sg_emb + n_periph] + list(ff_hidden) + [num_classes]
    params["ffnn"] = [dense(keys[8 + i], ff_dims[i], ff_dims[i + 1])
                      for i in range(len(ff_dims) - 1)]
    return params


# --------------------------------------------------------------------- main --

if __name__ == "__main__":
    # module hyper-parameters (small, consistent with the forward pass)
    numSceneGraphFeatures = 8
    sceneGraphEmbeddingSize = 16
    imgEmbeddingSize = 32
    reducedImgEmbeddingSize = 16
    encoderHiddenLayers = [32]
    numClasses = 5
    n_peripheralInputs = 4
    feedForwardHiddenLayers = [32]

    key = jax.random.PRNGKey(0)
    k_param, k_x, k_edge, k_img, k_per = jax.random.split(key, 5)

    params = init_params(
        k_param, numSceneGraphFeatures, sceneGraphEmbeddingSize,
        imgEmbeddingSize, reducedImgEmbeddingSize, encoderHiddenLayers,
        numClasses, n_peripheralInputs, feedForwardHiddenLayers)

    # synthetic scene graph: 10 nodes, 20 directed edges
    num_nodes, num_edges = 10, 20
    sg_x = jax.random.normal(k_x, (num_nodes, numSceneGraphFeatures),
                             jnp.float32)
    sg_edge_index = jax.random.randint(k_edge, (2, num_edges), 0, num_nodes,
                                       jnp.int32)

    img_embedding = jax.random.normal(k_img, (1, imgEmbeddingSize), jnp.float32)
    peripheral_inputs = jax.random.normal(k_per, (1, n_peripheralInputs),
                                          jnp.float32)

    logits = combiner_forward(params, sg_x, sg_edge_index,
                              img_embedding, peripheral_inputs)
    logits = jax.block_until_ready(logits)
    assert logits.shape == (1, numClasses)

    # correctness check against the pure-JAX reference (un-folded math)
    ref = reference_forward(params, sg_x, sg_edge_index,
                            img_embedding, peripheral_inputs)
    assert jnp.allclose(logits, ref, atol=1e-4, rtol=1e-4), (logits, ref)

    print("KERNEL_OK")
</pallas_src>

<mosaic_0001>
module attributes {stable_mosaic.version = 11 : i64} {
  func.func @_fused_combiner_kernel(%arg0: memref<10x10xf32, #tpu.memory_space<vmem>>, %arg1: memref<10x8xf32, #tpu.memory_space<vmem>>, %arg2: memref<8x16xf32, #tpu.memory_space<vmem>>, %arg3: memref<1x16xf32, #tpu.memory_space<vmem>>, %arg4: memref<16x16xf32, #tpu.memory_space<vmem>>, %arg5: memref<1x16xf32, #tpu.memory_space<vmem>>, %arg6: memref<1x32xf32, #tpu.memory_space<vmem>>, %arg7: memref<1x4xf32, #tpu.memory_space<vmem>>, %arg8: memref<32x32xf32, #tpu.memory_space<vmem>>, %arg9: memref<1x32xf32, #tpu.memory_space<vmem>>, %arg10: memref<32x16xf32, #tpu.memory_space<vmem>>, %arg11: memref<1x16xf32, #tpu.memory_space<vmem>>, %arg12: memref<36x32xf32, #tpu.memory_space<vmem>>, %arg13: memref<1x32xf32, #tpu.memory_space<vmem>>, %arg14: memref<32x5xf32, #tpu.memory_space<vmem>>, %arg15: memref<1x5xf32, #tpu.memory_space<vmem>>, %arg16: memref<1x5xf32, #tpu.memory_space<vmem>>, %arg17: memref<1x36xf32, #tpu.memory_space<vmem>>) attributes {dimension_semantics = [], scalar_prefetch = 0 : i64, scratch_operands = 1 : i64, tpu.core_type = #tpu.core_type<tc>} {
    %c0 = arith.constant 0 : index
    %c0_0 = arith.constant 0 : index
    %0 = vector.load %arg0[%c0, %c0_0] : memref<10x10xf32, #tpu.memory_space<vmem>>, vector<10x10xf32>
    %c0_1 = arith.constant 0 : index
    %c0_2 = arith.constant 0 : index
    %1 = vector.load %arg1[%c0_1, %c0_2] : memref<10x8xf32, #tpu.memory_space<vmem>>, vector<10x8xf32>
    %cst = arith.constant dense<0.000000e+00> : vector<10x8xf32>
    %2 = tpu.matmul %0, %1, %cst {dimension_numbers = #tpu.dot_dimension_numbers<[1], [0], [0], [1], [0, 0, 1, 1], [], []>} : vector<10x10xf32>, vector<10x8xf32>, vector<10x8xf32> -> vector<10x8xf32>
    %c0_3 = arith.constant 0 : index
    %c0_4 = arith.constant 0 : index
    %3 = vector.load %arg2[%c0_3, %c0_4] : memref<8x16xf32, #tpu.memory_space<vmem>>, vector<8x16xf32>
    %cst_5 = arith.constant dense<0.000000e+00> : vector<10x16xf32>
    %4 = tpu.matmul %2, %3, %cst_5 {dimension_numbers = #tpu.dot_dimension_numbers<[1], [0], [0], [1], [0, 0, 1, 1], [], []>} : vector<10x8xf32>, vector<8x16xf32>, vector<10x16xf32> -> vector<10x16xf32>
    %c0_6 = arith.constant 0 : index
    %c0_7 = arith.constant 0 : index
    %5 = vector.load %arg3[%c0_6, %c0_7] : memref<1x16xf32, #tpu.memory_space<vmem>>, vector<1x16xf32>
    %6 = vector.broadcast %5 : vector<1x16xf32> to vector<10x16xf32>
    %7 = arith.addf %4, %6 : vector<10x16xf32>
    %cst_8 = arith.constant 0.000000e+00 : f32
    %8 = vector.broadcast %cst_8 : f32 to vector<10x16xf32>
    %9 = arith.maximumf %7, %8 : vector<10x16xf32>
    %c0_9 = arith.constant 0 : index
    %c0_10 = arith.constant 0 : index
    %10 = vector.load %arg0[%c0_9, %c0_10] : memref<10x10xf32, #tpu.memory_space<vmem>>, vector<10x10xf32>
    %cst_11 = arith.constant dense<0.000000e+00> : vector<10xf32>
    %11 = vector.multi_reduction <add>, %10, %cst_11 [0] : vector<10x10xf32> to vector<10xf32>
    %12 = vector.shape_cast %11 : vector<10xf32> to vector<1x10xf32>
    %cst_12 = arith.constant 1.000000e+01 : f32
    %13 = vector.broadcast %cst_12 : f32 to vector<1x10xf32>
    %14 = arith.divf %12, %13 : vector<1x10xf32>
    %cst_13 = arith.constant dense<0.000000e+00> : vector<1x16xf32>
    %15 = tpu.matmul %14, %9, %cst_13 {dimension_numbers = #tpu.dot_dimension_numbers<[1], [0], [0], [1], [0, 0, 1, 1], [], []>} : vector<1x10xf32>, vector<10x16xf32>, vector<1x16xf32> -> vector<1x16xf32>
    %c0_14 = arith.constant 0 : index
    %c0_15 = arith.constant 0 : index
    %16 = vector.load %arg4[%c0_14, %c0_15] : memref<16x16xf32, #tpu.memory_space<vmem>>, vector<16x16xf32>
    %cst_16 = arith.constant dense<0.000000e+00> : vector<1x16xf32>
    %17 = tpu.matmul %15, %16, %cst_16 {dimension_numbers = #tpu.dot_dimension_numbers<[1], [0], [0], [1], [0, 0, 1, 1], [], []>} : vector<1x16xf32>, vector<16x16xf32>, vector<1x16xf32> -> vector<1x16xf32>
    %c0_17 = arith.constant 0 : index
    %c0_18 = arith.constant 0 : index
    %18 = vector.load %arg5[%c0_17, %c0_18] : memref<1x16xf32, #tpu.memory_space<vmem>>, vector<1x16xf32>
    %19 = arith.addf %17, %18 : vector<1x16xf32>
    %c0_19 = arith.constant 0 : index
    %c0_20 = arith.constant 0 : index
    %20 = vector.load %arg6[%c0_19, %c0_20] : memref<1x32xf32, #tpu.memory_space<vmem>>, vector<1x32xf32>
    %c0_21 = arith.constant 0 : index
    %c0_22 = arith.constant 0 : index
    %21 = vector.load %arg8[%c0_21, %c0_22] : memref<32x32xf32, #tpu.memory_space<vmem>>, vector<32x32xf32>
    %c0_23 = arith.constant 0 : index
    %c0_24 = arith.constant 0 : index
    %22 = vector.load %arg9[%c0_23, %c0_24] : memref<1x32xf32, #tpu.memory_space<vmem>>, vector<1x32xf32>
    %cst_25 = arith.constant dense<0.000000e+00> : vector<1x32xf32>
    %23 = tpu.matmul %20, %21, %cst_25 {dimension_numbers = #tpu.dot_dimension_numbers<[1], [0], [0], [1], [0, 0, 1, 1], [], []>} : vector<1x32xf32>, vector<32x32xf32>, vector<1x32xf32> -> vector<1x32xf32>
    %24 = arith.addf %23, %22 : vector<1x32xf32>
    %cst_26 = arith.constant 0.000000e+00 : f32
    %25 = vector.broadcast %cst_26 : f32 to vector<1x32xf32>
    %26 = arith.maximumf %24, %25 : vector<1x32xf32>
    %c0_27 = arith.constant 0 : index
    %c0_28 = arith.constant 0 : index
    %27 = vector.load %arg10[%c0_27, %c0_28] : memref<32x16xf32, #tpu.memory_space<vmem>>, vector<32x16xf32>
    %c0_29 = arith.constant 0 : index
    %c0_30 = arith.constant 0 : index
    %28 = vector.load %arg11[%c0_29, %c0_30] : memref<1x16xf32, #tpu.memory_space<vmem>>, vector<1x16xf32>
    %cst_31 = arith.constant dense<0.000000e+00> : vector<1x16xf32>
    %29 = tpu.matmul %26, %27, %cst_31 {dimension_numbers = #tpu.dot_dimension_numbers<[1], [0], [0], [1], [0, 0, 1, 1], [], []>} : vector<1x32xf32>, vector<32x16xf32>, vector<1x16xf32> -> vector<1x16xf32>
    %30 = arith.addf %29, %28 : vector<1x16xf32>
    %cst_32 = arith.constant 0.000000e+00 : f32
    %31 = vector.broadcast %cst_32 : f32 to vector<1x16xf32>
    %32 = arith.maximumf %30, %31 : vector<1x16xf32>
    %c0_33 = arith.constant 0 : index
    %c0_34 = arith.constant 0 : index
    %33 = vector.load %arg17[%c0_33, %c0_34] : memref<1x36xf32, #tpu.memory_space<vmem>>, vector<1x16xf32>
    tpu.vector_store %arg17[%c0_33, %c0_34], %32 {strides = array<i32>} : memref<1x36xf32, #tpu.memory_space<vmem>>, vector<1x16xf32>,
    %c0_35 = arith.constant 0 : index
    %c16 = arith.constant 16 : index
    %34 = vector.load %arg17[%c0_35, %c16] : memref<1x36xf32, #tpu.memory_space<vmem>>, vector<1x16xf32>
    tpu.vector_store %arg17[%c0_35, %c16], %19 {strides = array<i32>} : memref<1x36xf32, #tpu.memory_space<vmem>>, vector<1x16xf32>,
    %c0_36 = arith.constant 0 : index
    %c0_37 = arith.constant 0 : index
    %35 = vector.load %arg7[%c0_36, %c0_37] : memref<1x4xf32, #tpu.memory_space<vmem>>, vector<1x4xf32>
    %c0_38 = arith.constant 0 : index
    %c32 = arith.constant 32 : index
    %36 = vector.load %arg17[%c0_38, %c32] : memref<1x36xf32, #tpu.memory_space<vmem>>, vector<1x4xf32>
    tpu.vector_store %arg17[%c0_38, %c32], %35 {strides = array<i32>} : memref<1x36xf32, #tpu.memory_space<vmem>>, vector<1x4xf32>,
    %c0_39 = arith.constant 0 : index
    %c0_40 = arith.constant 0 : index
    %37 = vector.load %arg17[%c0_39, %c0_40] : memref<1x36xf32, #tpu.memory_space<vmem>>, vector<1x36xf32>
    %c0_41 = arith.constant 0 : index
    %c0_42 = arith.constant 0 : index
    %38 = vector.load %arg12[%c0_41, %c0_42] : memref<36x32xf32, #tpu.memory_space<vmem>>, vector<36x32xf32>
    %c0_43 = arith.constant 0 : index
    %c0_44 = arith.constant 0 : index
    %39 = vector.load %arg13[%c0_43, %c0_44] : memref<1x32xf32, #tpu.memory_space<vmem>>, vector<1x32xf32>
    %cst_45 = arith.constant dense<0.000000e+00> : vector<1x32xf32>
    %40 = tpu.matmul %37, %38, %cst_45 {dimension_numbers = #tpu.dot_dimension_numbers<[1], [0], [0], [1], [0, 0, 1, 1], [], []>} : vector<1x36xf32>, vector<36x32xf32>, vector<1x32xf32> -> vector<1x32xf32>
    %41 = arith.addf %40, %39 : vector<1x32xf32>
    %cst_46 = arith.constant 0.000000e+00 : f32
    %42 = vector.broadcast %cst_46 : f32 to vector<1x32xf32>
    %43 = arith.maximumf %41, %42 : vector<1x32xf32>
    %c0_47 = arith.constant 0 : index
    %c0_48 = arith.constant 0 : index
    %44 = vector.load %arg14[%c0_47, %c0_48] : memref<32x5xf32, #tpu.memory_space<vmem>>, vector<32x5xf32>
    %c0_49 = arith.constant 0 : index
    %c0_50 = arith.constant 0 : index
    %45 = vector.load %arg15[%c0_49, %c0_50] : memref<1x5xf32, #tpu.memory_space<vmem>>, vector<1x5xf32>
    %cst_51 = arith.constant dense<0.000000e+00> : vector<1x5xf32>
    %46 = tpu.matmul %43, %44, %cst_51 {dimension_numbers = #tpu.dot_dimension_numbers<[1], [0], [0], [1], [0, 0, 1, 1], [], []>} : vector<1x32xf32>, vector<32x5xf32>, vector<1x5xf32> -> vector<1x5xf32>
    %47 = arith.addf %46, %45 : vector<1x5xf32>
    %c0_52 = arith.constant 0 : index
    %c0_53 = arith.constant 0 : index
    %48 = vector.load %arg16[%c0_52, %c0_53] : memref<1x5xf32, #tpu.memory_space<vmem>>, vector<1x5xf32>
    tpu.vector_store %arg16[%c0_52, %c0_53], %47 {strides = array<i32>} : memref<1x5xf32, #tpu.memory_space<vmem>>, vector<1x5xf32>,
    return
  }
}

</mosaic_0001>

<llo_original>
// kernel: combiner_forward.1
$region0: #{combiner_forward.1}
  #allocation0 [shape = 'u32[]', space=smem, size = 0x4, offset = 0x4, fixed_abs, tag = 'smem constant byte address 0x4 - core index']
  #allocation1 [shape = 'u32[144,128]{1,0:T(1,128)}', space=vmem, size = 0x12000, scoped, tag = 'internal scratch']
  #allocation2 [shape = 'f32[1,36]{1,0:T(1,128)}', space=vmem, size = 0x200, scoped, tag = 'scratch operand']
  %s0 = inlined_call_operand.vmem [shape: f32[10,10], index: 0, kind: input, shape index: {}]
  %s1 = inlined_call_operand.vmem [shape: f32[10,8], index: 1, kind: input, shape index: {}]
  %s2 = inlined_call_operand.vmem [shape: f32[8,16], index: 2, kind: input, shape index: {}]
  %s3 = inlined_call_operand.vmem [shape: f32[1,16], index: 3, kind: input, shape index: {}]
  %s4 = inlined_call_operand.vmem [shape: f32[16,16], index: 4, kind: input, shape index: {}]
  %s5 = inlined_call_operand.vmem [shape: f32[1,16], index: 5, kind: input, shape index: {}]
  %s6 = inlined_call_operand.vmem [shape: f32[1,32], index: 6, kind: input, shape index: {}]
  %s7 = inlined_call_operand.vmem [shape: f32[1,4], index: 7, kind: input, shape index: {}]
  %s8 = inlined_call_operand.vmem [shape: f32[32,32], index: 8, kind: input, shape index: {}]
  %s9 = inlined_call_operand.vmem [shape: f32[1,32], index: 9, kind: input, shape index: {}]
  %s10 = inlined_call_operand.vmem [shape: f32[32,16], index: 10, kind: input, shape index: {}]
  %s11 = inlined_call_operand.vmem [shape: f32[1,16], index: 11, kind: input, shape index: {}]
  %s12 = inlined_call_operand.vmem [shape: f32[36,32], index: 12, kind: input, shape index: {}]
  %s13 = inlined_call_operand.vmem [shape: f32[1,32], index: 13, kind: input, shape index: {}]
  %s14 = inlined_call_operand.vmem [shape: f32[32,5], index: 14, kind: input, shape index: {}]
  %s15 = inlined_call_operand.vmem [shape: f32[1,5], index: 15, kind: input, shape index: {}]
  %s16 = inlined_call_operand.hbm [shape: f32[1,5], index: 16, kind: output, shape index: {}]
  %s17 = sld [smem:[#allocation0]]
  $region74: #{combiner_forward.1} parent=0
    _
  %s19 = ssub.s32 1, %s17
  %s20 = scalar_select 0, %s19, %s17
  $region1: #{combiner_forward.1} parent=0
    #allocation3 [shape = 'u8[512]{0}', space=vmem, size = 0x400, scoped, tag = 'output window, operand 0, single buffered']
    #allocation4 [shape = 's32[1]{0}', space=sflag, size = 0x4, scoped, tag = 'scoped memory for combiner_forward.1']
    %21 = vsyncpa [#allocation4], 0
    // Predicated region
    $region2: #{combiner_forward.1} parent=1 // pred_check
      _
    $region3: #{combiner_forward.1} parent=1 // pred_check_branch
      %23 = sbr.rel (0) target = $region5
    $region4: #{combiner_forward.1} parent=1 // pred_region
      _
    $region5: #{combiner_forward.1} parent=1 // pred_fallthru
      _
    // Predicated region
    $region6: #{combiner_forward.1} parent=1 // pred_check
      _
    $region7: #{combiner_forward.1} parent=1 // pred_check_branch
      %25 = sbr.rel (0) target = $region9
    $region8: #{combiner_forward.1} parent=1 // pred_region
      _
    $region9: #{combiner_forward.1} parent=1 // pred_fallthru
      _
    // Predicated region
    $region10: #{combiner_forward.1} parent=1 // pred_check
      _
    $region11: #{combiner_forward.1} parent=1 // pred_check_branch
      %27 = sbr.rel (0) target = $region13
    $region12: #{combiner_forward.1} parent=1 // pred_region
      _
    $region13: #{combiner_forward.1} parent=1 // pred_fallthru
      _
    // Predicated region
    $region14: #{combiner_forward.1} parent=1 // pred_check
      _
    $region15: #{combiner_forward.1} parent=1 // pred_check_branch
      %29 = sbr.rel (0) target = $region17
    $region16: #{combiner_forward.1} parent=1 // pred_region
      _
    $region17: #{combiner_forward.1} parent=1 // pred_fallthru
      _
    // Predicated region
    $region18: #{combiner_forward.1} parent=1 // pred_check
      _
    $region19: #{combiner_forward.1} parent=1 // pred_check_branch
      %31 = sbr.rel (0) target = $region21
    $region20: #{combiner_forward.1} parent=1 // pred_region
      _
    $region21: #{combiner_forward.1} parent=1 // pred_fallthru
      _
    // Predicated region
    $region22: #{combiner_forward.1} parent=1 // pred_check
      _
    $region23: #{combiner_forward.1} parent=1 // pred_check_branch
      %33 = sbr.rel (0) target = $region25
    $region24: #{combiner_forward.1} parent=1 // pred_region
      _
    $region25: #{combiner_forward.1} parent=1 // pred_fallthru
      _
    // Predicated region
    $region26: #{combiner_forward.1} parent=1 // pred_check
      _
    $region27: #{combiner_forward.1} parent=1 // pred_check_branch
      %35 = sbr.rel (0) target = $region29
    $region28: #{combiner_forward.1} parent=1 // pred_region
      _
    $region29: #{combiner_forward.1} parent=1 // pred_fallthru
      _
    // Predicated region
    $region30: #{combiner_forward.1} parent=1 // pred_check
      _
    $region31: #{combiner_forward.1} parent=1 // pred_check_branch
      %37 = sbr.rel (0) target = $region33
    $region32: #{combiner_forward.1} parent=1 // pred_region
      _
    $region33: #{combiner_forward.1} parent=1 // pred_fallthru
      _
    // Predicated region
    $region34: #{combiner_forward.1} parent=1 // pred_check
      _
    $region35: #{combiner_forward.1} parent=1 // pred_check_branch
      %39 = sbr.rel (0) target = $region37
    $region36: #{combiner_forward.1} parent=1 // pred_region
      _
    $region37: #{combiner_forward.1} parent=1 // pred_fallthru
      _
    // Predicated region
    $region38: #{combiner_forward.1} parent=1 // pred_check
      _
    $region39: #{combiner_forward.1} parent=1 // pred_check_branch
      %41 = sbr.rel (0) target = $region41
    $region40: #{combiner_forward.1} parent=1 // pred_region
      _
    $region41: #{combiner_forward.1} parent=1 // pred_fallthru
      _
    // Predicated region
    $region42: #{combiner_forward.1} parent=1 // pred_check
      _
    $region43: #{combiner_forward.1} parent=1 // pred_check_branch
      %43 = sbr.rel (0) target = $region45
    $region44: #{combiner_forward.1} parent=1 // pred_region
      _
    $region45: #{combiner_forward.1} parent=1 // pred_fallthru
      _
    // Predicated region
    $region46: #{combiner_forward.1} parent=1 // pred_check
      _
    $region47: #{combiner_forward.1} parent=1 // pred_check_branch
      %45 = sbr.rel (0) target = $region49
    $region48: #{combiner_forward.1} parent=1 // pred_region
      _
    $region49: #{combiner_forward.1} parent=1 // pred_fallthru
      _
    // Predicated region
    $region50: #{combiner_forward.1} parent=1 // pred_check
      _
    $region51: #{combiner_forward.1} parent=1 // pred_check_branch
      %47 = sbr.rel (0) target = $region53
    $region52: #{combiner_forward.1} parent=1 // pred_region
      _
    $region53: #{combiner_forward.1} parent=1 // pred_fallthru
      _
    // Predicated region
    $region54: #{combiner_forward.1} parent=1 // pred_check
      _
    $region55: #{combiner_forward.1} parent=1 // pred_check_branch
      %49 = sbr.rel (0) target = $region57
    $region56: #{combiner_forward.1} parent=1 // pred_region
      _
    $region57: #{combiner_forward.1} parent=1 // pred_fallthru
      _
    // Predicated region
    $region58: #{combiner_forward.1} parent=1 // pred_check
      _
    $region59: #{combiner_forward.1} parent=1 // pred_check_branch
      %51 = sbr.rel (0) target = $region61
    $region60: #{combiner_forward.1} parent=1 // pred_region
      _
    $region61: #{combiner_forward.1} parent=1 // pred_fallthru
      _
    // Predicated region
    $region62: #{combiner_forward.1} parent=1 // pred_check
      _
    $region63: #{combiner_forward.1} parent=1 // pred_check_branch
      %53 = sbr.rel (0) target = $region65
    $region64: #{combiner_forward.1} parent=1 // pred_region
      _
    $region65: #{combiner_forward.1} parent=1 // pred_fallthru
      _
    %v54 = vld [vmem:[%s0] sm:$0xff]
    %v55 = vld [vmem:[%s0 + $0x8] sm:$0x3]
    %v56 = vld [vmem:[%s1] sm:$0xff]
    %v57 = vld [vmem:[%s1 + $0x8] sm:$0x3]
    %vm58 = vcmask 80896
    %v60 = vsel %vm58, %v54, 0
    %v63 = vsel %vm58, %v55, 0
    %vm65 = vcmask 1041408
    %v67 = vsel %vm65, %v57, 0
    %69 = vmatprep.subr.mxu0 0.0
    %70 = vmatpush1.msra.mxu0 %v56
    %71 = vmatprep.subr.mxu0 0.0
    %72 = vmatpush1.msra.mxu0 %v67
    %73 = vmatprep.subr.mxu0 0.0
    %74 = vmatpush1.msra.mxu0 0.0
    %75 = vmatprep.subr.mxu0 0.0
    %76 = vmatpush1.msra.mxu0 0.0
    %77 = vmatprep.subr.mxu0 0.0
    %78 = vmatpush1.msra.mxu0 0.0
    %79 = vmatprep.subr.mxu0 0.0
    %80 = vmatpush1.msra.mxu0 0.0
    %81 = vmatprep.subr.mxu0 0.0
    %82 = vmatpush1.msra.mxu0 0.0
    %83 = vmatprep.subr.mxu0 0.0
    %84 = vmatpush1.msra.mxu0 0.0
    %85 = vmatprep.subr.mxu0 0.0
    %86 = vmatpush1.msra.mxu0 0.0
    %87 = vmatprep.subr.mxu0 0.0
    %88 = vmatpush1.msra.mxu0 0.0
    %89 = vmatprep.subr.mxu0 0.0
    %90 = vmatpush1.msra.mxu0 0.0
    %91 = vmatprep.subr.mxu0 0.0
    %92 = vmatpush1.msra.mxu0 0.0
    %93 = vmatprep.subr.mxu0 0.0
    %94 = vmatpush1.msra.mxu0 0.0
    %95 = vmatprep.subr.mxu0 0.0
    %96 = vmatpush1.msra.mxu0 0.0
    %97 = vmatprep.subr.mxu0 0.0
    %98 = vmatpush1.msra.mxu0 0.0
    %99 = vmatprep.subr.mxu0 0.0
    %100 = vmatpush1.msra.mxu0 0.0
    %101 = vmatprep.subr.mxu0 0.0
    %102 = vmatpush1.msra.mxu0 0.0
    %103 = vmatprep.subr.mxu0 0.0
    %104 = vmatpush1.msra.mxu0 0.0
    %105 = vmatprep.subr.mxu0 0.0
    %106 = vmatpush1.msra.mxu0 0.0
    %107 = vmatprep.subr.mxu0 0.0
    %108 = vmatpush1.msra.mxu0 0.0
    %109 = vmatprep.subr.mxu0 0.0
    %110 = vmatpush1.msra.mxu0 0.0
    %111 = vmatprep.subr.mxu0 0.0
    %112 = vmatpush1.msra.mxu0 0.0
    %113 = vmatprep.subr.mxu0 0.0
    %114 = vmatpush1.msra.mxu0 0.0
    %115 = vmatprep.subr.mxu0 0.0
    %116 = vmatpush1.msra.mxu0 0.0
    %117 = vmatprep.subr.mxu0 0.0
    %118 = vmatpush1.msra.mxu0 0.0
    %119 = vmatprep.subr.mxu0 0.0
    %120 = vmatpush1.msra.mxu0 0.0
    %121 = vmatprep.subr.mxu0 0.0
    %122 = vmatpush1.msra.mxu0 0.0
    %123 = vmatprep.subr.mxu0 0.0
    %124 = vmatpush1.msra.mxu0 0.0
    %125 = vmatprep.subr.mxu0 0.0
    %126 = vmatpush1.msra.mxu0 0.0
    %127 = vmatprep.subr.mxu0 0.0
    %128 = vmatpush1.msra.mxu0 0.0
    %129 = vmatprep.subr.mxu0 0.0
    %130 = vmatpush1.msra.mxu0 0.0
    %131 = vmatprep.subr.mxu0 0.0
    %132 = vmatpush1.msra.mxu0 0.0
    %133 = vmatprep.mubr.f32.mxu0 0.0
    %134 = vmatmul.mubr.f32.gmra.mrb[0].mxu0 %v60
    %v135 = vpop.f32.mrb[0].mxu0
    %v136 = vadd.f32 0.0, %v135
    %v137 = vpop.f32.mrb[0].mxu0
    %138 = vmatprep.mubr.f32.mxu0 0.0
    %139 = vmatmul.mubr.f32.gmra.mrb[0].mxu0 %v63
    %v140 = vpop.f32.mrb[0].mxu0
    %v141 = vadd.f32 0.0, %v140
    %v142 = vpop.f32.mrb[0].mxu0
    %143 = vdwg.mxu0
    %v144 = vld [vmem:[%s2] sm:$0xff]
    %v145 = vld [vmem:[%s3] sm:$0x1]
    %v147 = vlaneseq
    %v148 = vshrl.u32 %v147, 7
    %v149 = vsub.s32 0, %v148
    %v150 = vrot.slane %v145, %v149
    %vm152 = vcmask 64512
    %v154 = vsel %vm152, %v136, 0
    %v157 = vsel %vm152, %v141, 0
    %159 = vmatprep.subr.mxu0 0.0
    %160 = vmatpush1.msra.mxu0 %v144
    %161 = vmatprep.subr.mxu0 0.0
    %162 = vmatpush1.msra.mxu0 0.0
    %163 = vmatprep.subr.mxu0 0.0
    %164 = vmatpush1.msra.mxu0 0.0
    %165 = vmatprep.subr.mxu0 0.0
    %166 = vmatpush1.msra.mxu0 0.0
    %167 = vmatprep.subr.mxu0 0.0
    %168 = vmatpush1.msra.mxu0 0.0
    %169 = vmatprep.subr.mxu0 0.0
    %170 = vmatpush1.msra.mxu0 0.0
    %171 = vmatprep.subr.mxu0 0.0
    %172 = vmatpush1.msra.mxu0 0.0
    %173 = vmatprep.subr.mxu0 0.0
    %174 = vmatpush1.msra.mxu0 0.0
    %175 = vmatprep.subr.mxu0 0.0
    %176 = vmatpush1.msra.mxu0 0.0
    %177 = vmatprep.subr.mxu0 0.0
    %178 = vmatpush1.msra.mxu0 0.0
    %179 = vmatprep.subr.mxu0 0.0
    %180 = vmatpush1.msra.mxu0 0.0
    %181 = vmatprep.subr.mxu0 0.0
    %182 = vmatpush1.msra.mxu0 0.0
    %183 = vmatprep.subr.mxu0 0.0
    %184 = vmatpush1.msra.mxu0 0.0
    %185 = vmatprep.subr.mxu0 0.0
    %186 = vmatpush1.msra.mxu0 0.0
    %187 = vmatprep.subr.mxu0 0.0
    %188 = vmatpush1.msra.mxu0 0.0
    %189 = vmatprep.subr.mxu0 0.0
    %190 = vmatpush1.msra.mxu0 0.0
    %191 = vmatprep.subr.mxu0 0.0
    %192 = vmatpush1.msra.mxu0 0.0
    %193 = vmatprep.subr.mxu0 0.0
    %194 = vmatpush1.msra.mxu0 0.0
    %195 = vmatprep.subr.mxu0 0.0
    %196 = vmatpush1.msra.mxu0 0.0
    %197 = vmatprep.subr.mxu0 0.0
    %198 = vmatpush1.msra.mxu0 0.0
    %199 = vmatprep.subr.mxu0 0.0
    %200 = vmatpush1.msra.mxu0 0.0
    %201 = vmatprep.subr.mxu0 0.0
    %202 = vmatpush1.msra.mxu0 0.0
    %203 = vmatprep.subr.mxu0 0.0
    %204 = vmatpush1.msra.mxu0 0.0
    %205 = vmatprep.subr.mxu0 0.0
    %206 = vmatpush1.msra.mxu0 0.0
    %207 = vmatprep.subr.mxu0 0.0
    %208 = vmatpush1.msra.mxu0 0.0
    %209 = vmatprep.subr.mxu0 0.0
    %210 = vmatpush1.msra.mxu0 0.0
    %211 = vmatprep.subr.mxu0 0.0
    %212 = vmatpush1.msra.mxu0 0.0
    %213 = vmatprep.subr.mxu0 0.0
    %214 = vmatpush1.msra.mxu0 0.0
    %215 = vmatprep.subr.mxu0 0.0
    %216 = vmatpush1.msra.mxu0 0.0
    %217 = vmatprep.subr.mxu0 0.0
    %218 = vmatpush1.msra.mxu0 0.0
    %219 = vmatprep.subr.mxu0 0.0
    %220 = vmatpush1.msra.mxu0 0.0
    %221 = vmatprep.subr.mxu0 0.0
    %222 = vmatpush1.msra.mxu0 0.0
    %223 = vmatprep.mubr.f32.mxu0 0.0
    %224 = vmatmul.mubr.f32.gmra.mrb[0].mxu0 %v154
    %v225 = vpop.f32.mrb[0].mxu0
    %v226 = vadd.f32 %v150, %v225
    %v227 = vpop.f32.mrb[0].mxu0
    %228 = vmatprep.mubr.f32.mxu0 0.0
    %229 = vmatmul.mubr.f32.gmra.mrb[0].mxu0 %v157
    %v230 = vpop.f32.mrb[0].mxu0
    %v231 = vadd.f32 %v150, %v230
    %v232 = vpop.f32.mrb[0].mxu0
    %233 = vdwg.mxu0
    %v234 = vmax.f32 %v226, 0.0
    %v235 = vmax.f32 %v231, 0.0
    %v236 = vsel %vm58, %v54, 0.0
    %vm237 = vcmask 74752
    %v238 = vsel %vm237, %v55, 0.0
    %v239 = vadd.f32 %v236, %v238
    %v240 = vrot.slane %v239, 4
    %v241 = vadd.f32 %v239, %v240
    %v242 = vrot.slane %v241, 2
    %v243 = vadd.f32 %v241, %v242
    %v244 = vrot.slane %v243, 1
    %v245 = vadd.f32 %v243, %v244
    %v246 = vrcp.pop 10.0
    %v247 = vmul.f32 %v245, %v246
    %v249 = vsel %vm58, %v247, 0
    %v252 = vsel %vm65, %v235, 0
    %254 = vmatprep.subr.mxu0 0.0
    %255 = vmatpush1.msra.mxu0 %v234
    %256 = vmatprep.subr.mxu0 0.0
    %257 = vmatpush1.msra.mxu0 %v252
    %258 = vmatprep.subr.mxu0 0.0
    %259 = vmatpush1.msra.mxu0 0.0
    %260 = vmatprep.subr.mxu0 0.0
    %261 = vmatpush1.msra.mxu0 0.0
    %262 = vmatprep.subr.mxu0 0.0
    %263 = vmatpush1.msra.mxu0 0.0
    %264 = vmatprep.subr.mxu0 0.0
    %265 = vmatpush1.msra.mxu0 0.0
    %266 = vmatprep.subr.mxu0 0.0
    %267 = vmatpush1.msra.mxu0 0.0
    %268 = vmatprep.subr.mxu0 0.0
    %269 = vmatpush1.msra.mxu0 0.0
    %270 = vmatprep.subr.mxu0 0.0
    %271 = vmatpush1.msra.mxu0 0.0
    %272 = vmatprep.subr.mxu0 0.0
    %273 = vmatpush1.msra.mxu0 0.0
    %274 = vmatprep.subr.mxu0 0.0
    %275 = vmatpush1.msra.mxu0 0.0
    %276 = vmatprep.subr.mxu0 0.0
    %277 = vmatpush1.msra.mxu0 0.0
    %278 = vmatprep.subr.mxu0 0.0
    %279 = vmatpush1.msra.mxu0 0.0
    %280 = vmatprep.subr.mxu0 0.0
    %281 = vmatpush1.msra.mxu0 0.0
    %282 = vmatprep.subr.mxu0 0.0
    %283 = vmatpush1.msra.mxu0 0.0
    %284 = vmatprep.subr.mxu0 0.0
    %285 = vmatpush1.msra.mxu0 0.0
    %286 = vmatprep.subr.mxu0 0.0
    %287 = vmatpush1.msra.mxu0 0.0
    %288 = vmatprep.subr.mxu0 0.0
    %289 = vmatpush1.msra.mxu0 0.0
    %290 = vmatprep.subr.mxu0 0.0
    %291 = vmatpush1.msra.mxu0 0.0
    %292 = vmatprep.subr.mxu0 0.0
    %293 = vmatpush1.msra.mxu0 0.0
    %294 = vmatprep.subr.mxu0 0.0
    %295 = vmatpush1.msra.mxu0 0.0
    %296 = vmatprep.subr.mxu0 0.0
    %297 = vmatpush1.msra.mxu0 0.0
    %298 = vmatprep.subr.mxu0 0.0
    %299 = vmatpush1.msra.mxu0 0.0
    %300 = vmatprep.subr.mxu0 0.0
    %301 = vmatpush1.msra.mxu0 0.0
    %302 = vmatprep.subr.mxu0 0.0
    %303 = vmatpush1.msra.mxu0 0.0
    %304 = vmatprep.subr.mxu0 0.0
    %305 = vmatpush1.msra.mxu0 0.0
    %306 = vmatprep.subr.mxu0 0.0
    %307 = vmatpush1.msra.mxu0 0.0
    %308 = vmatprep.subr.mxu0 0.0
    %309 = vmatpush1.msra.mxu0 0.0
    %310 = vmatprep.subr.mxu0 0.0
    %311 = vmatpush1.msra.mxu0 0.0
    %312 = vmatprep.subr.mxu0 0.0
    %313 = vmatpush1.msra.mxu0 0.0
    %314 = vmatprep.subr.mxu0 0.0
    %315 = vmatpush1.msra.mxu0 0.0
    %316 = vmatprep.subr.mxu0 0.0
    %317 = vmatpush1.msra.mxu0 0.0
    %318 = vmatprep.mubr.f32.mxu0 0.0
    %319 = vmatmul.mubr.f32.gmra.mrb[0].mxu0 %v249
    %v320 = vpop.f32.mrb[0].mxu0
    %v321 = vadd.f32 0.0, %v320
    %v322 = vpop.f32.mrb[0].mxu0
    %323 = vdwg.mxu0
    %v324 = vld [vmem:[%s4] sm:$0xff]
    %v325 = vld [vmem:[%s4 + $0x8] sm:$0xff]
    %v326 = vld [vmem:[%s5] sm:$0x1]
    %vm327 = vcmask 130048
    %v329 = vsel %vm327, %v321, 0
    %331 = vmatprep.subr.mxu0 0.0
    %332 = vmatpush1.msra.mxu0 %v324
    %333 = vmatprep.subr.mxu0 0.0
    %334 = vmatpush1.msra.mxu0 %v325
    %335 = vmatprep.subr.mxu0 0.0
    %336 = vmatpush1.msra.mxu0 0.0
    %337 = vmatprep.subr.mxu0 0.0
    %338 = vmatpush1.msra.mxu0 0.0
    %339 = vmatprep.subr.mxu0 0.0
    %340 = vmatpush1.msra.mxu0 0.0
    %341 = vmatprep.subr.mxu0 0.0
    %342 = vmatpush1.msra.mxu0 0.0
    %343 = vmatprep.subr.mxu0 0.0
    %344 = vmatpush1.msra.mxu0 0.0
    %345 = vmatprep.subr.mxu0 0.0
    %346 = vmatpush1.msra.mxu0 0.0
    %347 = vmatprep.subr.mxu0 0.0
    %348 = vmatpush1.msra.mxu0 0.0
    %349 = vmatprep.subr.mxu0 0.0
    %350 = vmatpush1.msra.mxu0 0.0
    %351 = vmatprep.subr.mxu0 0.0
    %352 = vmatpush1.msra.mxu0 0.0
    %353 = vmatprep.subr.mxu0 0.0
    %354 = vmatpush1.msra.mxu0 0.0
    %355 = vmatprep.subr.mxu0 0.0
    %356 = vmatpush1.msra.mxu0 0.0
    %357 = vmatprep.subr.mxu0 0.0
    %358 = vmatpush1.msra.mxu0 0.0
    %359 = vmatprep.subr.mxu0 0.0
    %360 = vmatpush1.msra.mxu0 0.0
    %361 = vmatprep.subr.mxu0 0.0
    %362 = vmatpush1.msra.mxu0 0.0
    %363 = vmatprep.subr.mxu0 0.0
    %364 = vmatpush1.msra.mxu0 0.0
    %365 = vmatprep.subr.mxu0 0.0
    %366 = vmatpush1.msra.mxu0 0.0
    %367 = vmatprep.subr.mxu0 0.0
    %368 = vmatpush1.msra.mxu0 0.0
    %369 = vmatprep.subr.mxu0 0.0
    %370 = vmatpush1.msra.mxu0 0.0
    %371 = vmatprep.subr.mxu0 0.0
    %372 = vmatpush1.msra.mxu0 0.0
    %373 = vmatprep.subr.mxu0 0.0
    %374 = vmatpush1.msra.mxu0 0.0
    %375 = vmatprep.subr.mxu0 0.0
    %376 = vmatpush1.msra.mxu0 0.0
    %377 = vmatprep.subr.mxu0 0.0
    %378 = vmatpush1.msra.mxu0 0.0
    %379 = vmatprep.subr.mxu0 0.0
    %380 = vmatpush1.msra.mxu0 0.0
    %381 = vmatprep.subr.mxu0 0.0
    %382 = vmatpush1.msra.mxu0 0.0
    %383 = vmatprep.subr.mxu0 0.0
    %384 = vmatpush1.msra.mxu0 0.0
    %385 = vmatprep.subr.mxu0 0.0
    %386 = vmatpush1.msra.mxu0 0.0
    %387 = vmatprep.subr.mxu0 0.0
    %388 = vmatpush1.msra.mxu0 0.0
    %389 = vmatprep.subr.mxu0 0.0
    %390 = vmatpush1.msra.mxu0 0.0
    %391 = vmatprep.subr.mxu0 0.0
    %392 = vmatpush1.msra.mxu0 0.0
    %393 = vmatprep.subr.mxu0 0.0
    %394 = vmatpush1.msra.mxu0 0.0
    %395 = vmatprep.mubr.f32.mxu0 0.0
    %396 = vmatmul.mubr.f32.gmra.mrb[0].mxu0 %v329
    %v397 = vpop.f32.mrb[0].mxu0
    %v398 = vadd.f32 %v326, %v397
    %v399 = vpop.f32.mrb[0].mxu0
    %400 = vdwg.mxu0
    %v401 = vld [vmem:[%s6] sm:$0x1]
    %v402 = vld [vmem:[%s8] sm:$0xff]
    %v403 = vld [vmem:[%s8 + $0x8] sm:$0xff]
    %v404 = vld [vmem:[%s8 + $0x10] sm:$0xff]
    %v405 = vld [vmem:[%s8 + $0x18] sm:$0xff]
    %v406 = vld [vmem:[%s9] sm:$0x1]
    %vm407 = vcmask 261120
    %v409 = vsel %vm407, %v401, 0
    %411 = vmatprep.subr.mxu0 0.0
    %412 = vmatpush1.msra.mxu0 %v402
    %413 = vmatprep.subr.mxu0 0.0
    %414 = vmatpush1.msra.mxu0 %v403
    %415 = vmatprep.subr.mxu0 0.0
    %416 = vmatpush1.msra.mxu0 %v404
    %417 = vmatprep.subr.mxu0 0.0
    %418 = vmatpush1.msra.mxu0 %v405
    %419 = vmatprep.subr.mxu0 0.0
    %420 = vmatpush1.msra.mxu0 0.0
    %421 = vmatprep.subr.mxu0 0.0
    %422 = vmatpush1.msra.mxu0 0.0
    %423 = vmatprep.subr.mxu0 0.0
    %424 = vmatpush1.msra.mxu0 0.0
    %425 = vmatprep.subr.mxu0 0.0
    %426 = vmatpush1.msra.mxu0 0.0
    %427 = vmatprep.subr.mxu0 0.0
    %428 = vmatpush1.msra.mxu0 0.0
    %429 = vmatprep.subr.mxu0 0.0
    %430 = vmatpush1.msra.mxu0 0.0
    %431 = vmatprep.subr.mxu0 0.0
    %432 = vmatpush1.msra.mxu0 0.0
    %433 = vmatprep.subr.mxu0 0.0
    %434 = vmatpush1.msra.mxu0 0.0
    %435 = vmatprep.subr.mxu0 0.0
    %436 = vmatpush1.msra.mxu0 0.0
    %437 = vmatprep.subr.mxu0 0.0
    %438 = vmatpush1.msra.mxu0 0.0
    %439 = vmatprep.subr.mxu0 0.0
    %440 = vmatpush1.msra.mxu0 0.0
    %441 = vmatprep.subr.mxu0 0.0
    %442 = vmatpush1.msra.mxu0 0.0
    %443 = vmatprep.subr.mxu0 0.0
    %444 = vmatpush1.msra.mxu0 0.0
    %445 = vmatprep.subr.mxu0 0.0
    %446 = vmatpush1.msra.mxu0 0.0
    %447 = vmatprep.subr.mxu0 0.0
    %448 = vmatpush1.msra.mxu0 0.0
    %449 = vmatprep.subr.mxu0 0.0
    %450 = vmatpush1.msra.mxu0 0.0
    %451 = vmatprep.subr.mxu0 0.0
    %452 = vmatpush1.msra.mxu0 0.0
    %453 = vmatprep.subr.mxu0 0.0
    %454 = vmatpush1.msra.mxu0 0.0
    %455 = vmatprep.subr.mxu0 0.0
    %456 = vmatpush1.msra.mxu0 0.0
    %457 = vmatprep.subr.mxu0 0.0
    %458 = vmatpush1.msra.mxu0 0.0
    %459 = vmatprep.subr.mxu0 0.0
    %460 = vmatpush1.msra.mxu0 0.0
    %461 = vmatprep.subr.mxu0 0.0
    %462 = vmatpush1.msra.mxu0 0.0
    %463 = vmatprep.subr.mxu0 0.0
    %464 = vmatpush1.msra.mxu0 0.0
    %465 = vmatprep.subr.mxu0 0.0
    %466 = vmatpush1.msra.mxu0 0.0
    %467 = vmatprep.subr.mxu0 0.0
    %468 = vmatpush1.msra.mxu0 0.0
    %469 = vmatprep.subr.mxu0 0.0
    %470 = vmatpush1.msra.mxu0 0.0
    %471 = vmatprep.subr.mxu0 0.0
    %472 = vmatpush1.msra.mxu0 0.0
    %473 = vmatprep.subr.mxu0 0.0
    %474 = vmatpush1.msra.mxu0 0.0
    %475 = vmatprep.mubr.f32.mxu0 0.0
    %476 = vmatmul.mubr.f32.gmra.mrb[0].mxu0 %v409
    %v477 = vpop.f32.mrb[0].mxu0
    %v478 = vadd.f32 %v406, %v477
    %v479 = vpop.f32.mrb[0].mxu0
    %480 = vdwg.mxu0
    %v481 = vmax.f32 %v478, 0.0
    %v482 = vld [vmem:[%s10] sm:$0xff]
    %v483 = vld [vmem:[%s10 + $0x8] sm:$0xff]
    %v484 = vld [vmem:[%s10 + $0x10] sm:$0xff]
    %v485 = vld [vmem:[%s10 + $0x18] sm:$0xff]
    %v486 = vld [vmem:[%s11] sm:$0x1]
    %v488 = vsel %vm407, %v481, 0
    %490 = vmatprep.subr.mxu0 0.0
    %491 = vmatpush1.msra.mxu0 %v482
    %492 = vmatprep.subr.mxu0 0.0
    %493 = vmatpush1.msra.mxu0 %v483
    %494 = vmatprep.subr.mxu0 0.0
    %495 = vmatpush1.msra.mxu0 %v484
    %496 = vmatprep.subr.mxu0 0.0
    %497 = vmatpush1.msra.mxu0 %v485
    %498 = vmatprep.subr.mxu0 0.0
    %499 = vmatpush1.msra.mxu0 0.0
    %500 = vmatprep.subr.mxu0 0.0
    %501 = vmatpush1.msra.mxu0 0.0
    %502 = vmatprep.subr.mxu0 0.0
    %503 = vmatpush1.msra.mxu0 0.0
    %504 = vmatprep.subr.mxu0 0.0
    %505 = vmatpush1.msra.mxu0 0.0
    %506 = vmatprep.subr.mxu0 0.0
    %507 = vmatpush1.msra.mxu0 0.0
    %508 = vmatprep.subr.mxu0 0.0
    %509 = vmatpush1.msra.mxu0 0.0
    %510 = vmatprep.subr.mxu0 0.0
    %511 = vmatpush1.msra.mxu0 0.0
    %512 = vmatprep.subr.mxu0 0.0
    %513 = vmatpush1.msra.mxu0 0.0
    %514 = vmatprep.subr.mxu0 0.0
    %515 = vmatpush1.msra.mxu0 0.0
    %516 = vmatprep.subr.mxu0 0.0
    %517 = vmatpush1.msra.mxu0 0.0
    %518 = vmatprep.subr.mxu0 0.0
    %519 = vmatpush1.msra.mxu0 0.0
    %520 = vmatprep.subr.mxu0 0.0
    %521 = vmatpush1.msra.mxu0 0.0
    %522 = vmatprep.subr.mxu0 0.0
    %523 = vmatpush1.msra.mxu0 0.0
    %524 = vmatprep.subr.mxu0 0.0
    %525 = vmatpush1.msra.mxu0 0.0
    %526 = vmatprep.subr.mxu0 0.0
    %527 = vmatpush1.msra.mxu0 0.0
    %528 = vmatprep.subr.mxu0 0.0
    %529 = vmatpush1.msra.mxu0 0.0
    %530 = vmatprep.subr.mxu0 0.0
    %531 = vmatpush1.msra.mxu0 0.0
    %532 = vmatprep.subr.mxu0 0.0
    %533 = vmatpush1.msra.mxu0 0.0
    %534 = vmatprep.subr.mxu0 0.0
    %535 = vmatpush1.msra.mxu0 0.0
    %536 = vmatprep.subr.mxu0 0.0
    %537 = vmatpush1.msra.mxu0 0.0
    %538 = vmatprep.subr.mxu0 0.0
    %539 = vmatpush1.msra.mxu0 0.0
    %540 = vmatprep.subr.mxu0 0.0
    %541 = vmatpush1.msra.mxu0 0.0
    %542 = vmatprep.subr.mxu0 0.0
    %543 = vmatpush1.msra.mxu0 0.0
    %544 = vmatprep.subr.mxu0 0.0
    %545 = vmatpush1.msra.mxu0 0.0
    %546 = vmatprep.subr.mxu0 0.0
    %547 = vmatpush1.msra.mxu0 0.0
    %548 = vmatprep.subr.mxu0 0.0
    %549 = vmatpush1.msra.mxu0 0.0
    %550 = vmatprep.subr.mxu0 0.0
    %551 = vmatpush1.msra.mxu0 0.0
    %552 = vmatprep.subr.mxu0 0.0
    %553 = vmatpush1.msra.mxu0 0.0
    %554 = vmatprep.mubr.f32.mxu0 0.0
    %555 = vmatmul.mubr.f32.gmra.mrb[0].mxu0 %v488
    %v556 = vpop.f32.mrb[0].mxu0
    %v557 = vadd.f32 %v486, %v556
    %v558 = vpop.f32.mrb[0].mxu0
    %559 = vdwg.mxu0
    %v560 = vmax.f32 %v557, 0.0
    %vm561 = vcmask 122880
    %562 = vst.msk [vmem:[#allocation2] sm:$0x1] %vm561, %v560
    %564 = vrot.lane.b32.xlu0 %v398, 16
    %v565 = vpop.permute.xlu0 %564
    %vm567 = vcmask 254080
    %568 = vst.msk [vmem:[#allocation2] sm:$0x1] %vm567, %v565
    %v569 = vld [vmem:[%s7] sm:$0x1]
    %v571 = vlaneseq
    %v572 = vshrl.u32 %v571, 7
    %v573 = vsub.s32 0, %v572
    %v574 = vrot.slane %v569, %v573
    %575 = vrot.lane.b32.xlu0 %v574, 32
    %v576 = vpop.permute.xlu0 %575
    %vm578 = vcmask 286976
    %579 = vst.msk [vmem:[#allocation2] sm:$0x1] %vm578, %v576
    %v580 = vld [vmem:[#allocation2] sm:$0x1]
    %v581 = vld [vmem:[%s12] sm:$0xff]
    %v582 = vld [vmem:[%s12 + $0x8] sm:$0xff]
    %v583 = vld [vmem:[%s12 + $0x10] sm:$0xff]
    %v584 = vld [vmem:[%s12 + $0x18] sm:$0xff]
    %v585 = vld [vmem:[%s12 + $0x20] sm:$0xf]
    %v586 = vld [vmem:[%s13] sm:$0x1]
    %vm587 = vcmask 293888
    %v589 = vsel %vm587, %v580, 0
    %vm591 = vcmask 1043456
    %v593 = vsel %vm591, %v585, 0
    %595 = vmatprep.subr.mxu0 0.0
    %596 = vmatpush1.msra.mxu0 %v581
    %597 = vmatprep.subr.mxu0 0.0
    %598 = vmatpush1.msra.mxu0 %v582
    %599 = vmatprep.subr.mxu0 0.0
    %600 = vmatpush1.msra.mxu0 %v583
    %601 = vmatprep.subr.mxu0 0.0
    %602 = vmatpush1.msra.mxu0 %v584
    %603 = vmatprep.subr.mxu0 0.0
    %604 = vmatpush1.msra.mxu0 %v593
    %605 = vmatprep.subr.mxu0 0.0
    %606 = vmatpush1.msra.mxu0 0.0
    %607 = vmatprep.subr.mxu0 0.0
    %608 = vmatpush1.msra.mxu0 0.0
    %609 = vmatprep.subr.mxu0 0.0
    %610 = vmatpush1.msra.mxu0 0.0
    %611 = vmatprep.subr.mxu0 0.0
    %612 = vmatpush1.msra.mxu0 0.0
    %613 = vmatprep.subr.mxu0 0.0
    %614 = vmatpush1.msra.mxu0 0.0
    %615 = vmatprep.subr.mxu0 0.0
    %616 = vmatpush1.msra.mxu0 0.0
    %617 = vmatprep.subr.mxu0 0.0
    %618 = vmatpush1.msra.mxu0 0.0
    %619 = vmatprep.subr.mxu0 0.0
    %620 = vmatpush1.msra.mxu0 0.0
    %621 = vmatprep.subr.mxu0 0.0
    %622 = vmatpush1.msra.mxu0 0.0
    %623 = vmatprep.subr.mxu0 0.0
    %624 = vmatpush1.msra.mxu0 0.0
    %625 = vmatprep.subr.mxu0 0.0
    %626 = vmatpush1.msra.mxu0 0.0
    %627 = vmatprep.subr.mxu0 0.0
    %628 = vmatpush1.msra.mxu0 0.0
    %629 = vmatprep.subr.mxu0 0.0
    %630 = vmatpush1.msra.mxu0 0.0
    %631 = vmatprep.subr.mxu0 0.0
    %632 = vmatpush1.msra.mxu0 0.0
    %633 = vmatprep.subr.mxu0 0.0
    %634 = vmatpush1.msra.mxu0 0.0
    %635 = vmatprep.subr.mxu0 0.0
    %636 = vmatpush1.msra.mxu0 0.0
    %637 = vmatprep.subr.mxu0 0.0
    %638 = vmatpush1.msra.mxu0 0.0
    %639 = vmatprep.subr.mxu0 0.0
    %640 = vmatpush1.msra.mxu0 0.0
    %641 = vmatprep.subr.mxu0 0.0
    %642 = vmatpush1.msra.mxu0 0.0
    %643 = vmatprep.subr.mxu0 0.0
    %644 = vmatpush1.msra.mxu0 0.0
    %645 = vmatprep.subr.mxu0 0.0
    %646 = vmatpush1.msra.mxu0 0.0
    %647 = vmatprep.subr.mxu0 0.0
    %648 = vmatpush1.msra.mxu0 0.0
    %649 = vmatprep.subr.mxu0 0.0
    %650 = vmatpush1.msra.mxu0 0.0
    %651 = vmatprep.subr.mxu0 0.0
    %652 = vmatpush1.msra.mxu0 0.0
    %653 = vmatprep.subr.mxu0 0.0
    %654 = vmatpush1.msra.mxu0 0.0
    %655 = vmatprep.subr.mxu0 0.0
    %656 = vmatpush1.msra.mxu0 0.0
    %657 = vmatprep.subr.mxu0 0.0
    %658 = vmatpush1.msra.mxu0 0.0
    %659 = vmatprep.mubr.f32.mxu0 0.0
    %660 = vmatmul.mubr.f32.gmra.mrb[0].mxu0 %v589
    %v661 = vpop.f32.mrb[0].mxu0
    %v662 = vadd.f32 %v586, %v661
    %v663 = vpop.f32.mrb[0].mxu0
    %664 = vdwg.mxu0
    %v665 = vmax.f32 %v662, 0.0
    %v666 = vld [vmem:[%s14] sm:$0xff]
    %v667 = vld [vmem:[%s14 + $0x8] sm:$0xff]
    %v668 = vld [vmem:[%s14 + $0x10] sm:$0xff]
    %v669 = vld [vmem:[%s14 + $0x18] sm:$0xff]
    %v670 = vld [vmem:[%s15] sm:$0x1]
    %v672 = vsel %vm407, %v665, 0
    %674 = vmatprep.subr.mxu0 0.0
    %675 = vmatpush1.msra.mxu0 %v666
    %676 = vmatprep.subr.mxu0 0.0
    %677 = vmatpush1.msra.mxu0 %v667
    %678 = vmatprep.subr.mxu0 0.0
    %679 = vmatpush1.msra.mxu0 %v668
    %680 = vmatprep.subr.mxu0 0.0
    %681 = vmatpush1.msra.mxu0 %v669
    %682 = vmatprep.subr.mxu0 0.0
    %683 = vmatpush1.msra.mxu0 0.0
    %684 = vmatprep.subr.mxu0 0.0
    %685 = vmatpush1.msra.mxu0 0.0
    %686 = vmatprep.subr.mxu0 0.0
    %687 = vmatpush1.msra.mxu0 0.0
    %688 = vmatprep.subr.mxu0 0.0
    %689 = vmatpush1.msra.mxu0 0.0
    %690 = vmatprep.subr.mxu0 0.0
    %691 = vmatpush1.msra.mxu0 0.0
    %692 = vmatprep.subr.mxu0 0.0
    %693 = vmatpush1.msra.mxu0 0.0
    %694 = vmatprep.subr.mxu0 0.0
    %695 = vmatpush1.msra.mxu0 0.0
    %696 = vmatprep.subr.mxu0 0.0
    %697 = vmatpush1.msra.mxu0 0.0
    %698 = vmatprep.subr.mxu0 0.0
    %699 = vmatpush1.msra.mxu0 0.0
    %700 = vmatprep.subr.mxu0 0.0
    %701 = vmatpush1.msra.mxu0 0.0
    %702 = vmatprep.subr.mxu0 0.0
    %703 = vmatpush1.msra.mxu0 0.0
    %704 = vmatprep.subr.mxu0 0.0
    %705 = vmatpush1.msra.mxu0 0.0
    %706 = vmatprep.subr.mxu0 0.0
    %707 = vmatpush1.msra.mxu0 0.0
    %708 = vmatprep.subr.mxu0 0.0
    %709 = vmatpush1.msra.mxu0 0.0
    %710 = vmatprep.subr.mxu0 0.0
    %711 = vmatpush1.msra.mxu0 0.0
    %712 = vmatprep.subr.mxu0 0.0
    %713 = vmatpush1.msra.mxu0 0.0
    %714 = vmatprep.subr.mxu0 0.0
    %715 = vmatpush1.msra.mxu0 0.0
    %716 = vmatprep.subr.mxu0 0.0
    %717 = vmatpush1.msra.mxu0 0.0
    %718 = vmatprep.subr.mxu0 0.0
    %719 = vmatpush1.msra.mxu0 0.0
    %720 = vmatprep.subr.mxu0 0.0
    %721 = vmatpush1.msra.mxu0 0.0
    %722 = vmatprep.subr.mxu0 0.0
    %723 = vmatpush1.msra.mxu0 0.0
    %724 = vmatprep.subr.mxu0 0.0
    %725 = vmatpush1.msra.mxu0 0.0
    %726 = vmatprep.subr.mxu0 0.0
    %727 = vmatpush1.msra.mxu0 0.0
    %728 = vmatprep.subr.mxu0 0.0
    %729 = vmatpush1.msra.mxu0 0.0
    %730 = vmatprep.subr.mxu0 0.0
    %731 = vmatpush1.msra.mxu0 0.0
    %732 = vmatprep.subr.mxu0 0.0
    %733 = vmatpush1.msra.mxu0 0.0
    %734 = vmatprep.subr.mxu0 0.0
    %735 = vmatpush1.msra.mxu0 0.0
    %736 = vmatprep.subr.mxu0 0.0
    %737 = vmatpush1.msra.mxu0 0.0
    %738 = vmatprep.mubr.f32.mxu0 0.0
    %739 = vmatmul.mubr.f32.gmra.mrb[0].mxu0 %v672
    %v740 = vpop.f32.mrb[0].mxu0
    %v741 = vadd.f32 %v670, %v740
    %v742 = vpop.f32.mrb[0].mxu0
    %743 = vdwg.mxu0
    %vm744 = vcmask 32768
    %745 = vst.msk [vmem:[#allocation3] sm:$0x1] %vm744, %v741
    // Predicated region
    $region66: #{combiner_forward.1} parent=1 // pred_check
      _
    $region67: #{combiner_forward.1} parent=1 // pred_check_branch
      %747 = sbr.rel (0) target = $region69
    $region68: #{combiner_forward.1} parent=1 // pred_region
      %s749 = ssub.s32 16, 16
      %750 = vsyncadd [#allocation4], %s749
      %s752 = sshll.u32 [#allocation3], 4
      %s753 = int_to_ptr.vmem [resolvable:$true] %s752
      %755 = dma.vmem_to_hbm [thread:$0]  %s753, 16, %s16, [#allocation4]
    $region69: #{combiner_forward.1} parent=1 // pred_fallthru
      _
    // Predicated region
    $region70: #{combiner_forward.1} parent=1 // pred_check
      _
    $region71: #{combiner_forward.1} parent=1 // pred_check_branch
      %757 = sbr.rel (0) target = $region73
    $region72: #{combiner_forward.1} parent=1 // pred_region
      %758 = dma.done [#allocation4], 16
    $region73: #{combiner_forward.1} parent=1 // pred_fallthru
      _
    %759 = vsyncpa [#allocation4], 1

</llo_original>
